<compile_context>
chip_gen: v7x
topology: tpu7x:2x2x1
jax: 0.10.0
libtpu: 0.0.40
codegen_flags: <defaults>
</compile_context>

<pallas_src>
import functools

import jax
import jax.numpy as jnp
from jax import lax
from jax.experimental import pallas as pl
from jax.experimental.pallas import tpu as pltpu

LN_EPS = 1e-5
RBF_D_MIN, RBF_D_MAX, RBF_D_COUNT = 0.0, 20.0, 64  # rf2aa.util.rbf constants


# --------------------------------------------------------------------------
# Kernels
# --------------------------------------------------------------------------
def _msa_ln_kernel(msa_ref, g_ref, b_ref, out_ref):
    x = msa_ref[...].astype(jnp.float32)                 # (1, TL, d_msa)
    mean = jnp.mean(x, axis=-1, keepdims=True)
    var = jnp.mean(jnp.square(x - mean), axis=-1, keepdims=True)
    y = (x - mean) * lax.rsqrt(var + LN_EPS)
    out_ref[...] = (y * g_ref[...] + b_ref[...]).astype(out_ref.dtype)


def _pair_body(pair_ref, ca_rows_ref, ca_all_ref, mask_ref,
               gp_ref, bp_ref, w_ref, bj_ref, mu_ref, out_ref):
    # ---- LayerNorm(pair), staged into out_ref (small f32 live set) --------
    p = pair_ref[...].astype(jnp.float32)                # (1, TI, L, d_pair)
    mean = jnp.mean(p, axis=-1, keepdims=True)
    var = jnp.mean(jnp.square(p - mean), axis=-1, keepdims=True)
    pn = (p - mean) * lax.rsqrt(var + LN_EPS) * gp_ref[...] + bp_ref[...]
    out_ref[...] = pn.astype(out_ref.dtype)

    # ---- cdist(row tile of Ca, all Ca) via VPU broadcast-subtract ---------
    ca_rows = ca_rows_ref[0].astype(jnp.float32)         # (TI, 3)
    ca_all = ca_all_ref[0].astype(jnp.float32)           # (L, 3)
    diff = ca_rows[:, None, :] - ca_all[None, :, :]      # (TI, L, 3)
    d = jnp.sqrt(jnp.sum(diff * diff, axis=-1))          # (TI, L)

    ti, L = d.shape
    n = ti * L

    # ---- RBF(64) -> Linear(d_rbf, d_pair) ----------------------------------
    sigma = (RBF_D_MAX - RBF_D_MIN) / RBF_D_COUNT
    rbf = jnp.exp(-jnp.square((d.reshape(n, 1) - mu_ref[...]) / sigma))  # (n, d_rbf)
    if mask_ref is not None:
        rbf = rbf * mask_ref[...].astype(jnp.float32).reshape(n, 1)

    proj = jnp.dot(rbf, w_ref[...], preferred_element_type=jnp.float32)
    proj = proj + bj_ref[...]                            # (n, d_pair)
    d_pair = proj.shape[-1]

    out_ref[...] = (out_ref[...].astype(jnp.float32)
                    + proj.reshape(1, ti, L, d_pair)).astype(out_ref.dtype)


def _pair_kernel_mask(pair_ref, ca_rows_ref, ca_all_ref, mask_ref,
                      gp_ref, bp_ref, w_ref, bj_ref, mu_ref, out_ref):
    _pair_body(pair_ref, ca_rows_ref, ca_all_ref, mask_ref,
               gp_ref, bp_ref, w_ref, bj_ref, mu_ref, out_ref)


def _pair_kernel_nomask(pair_ref, ca_rows_ref, ca_all_ref,
                        gp_ref, bp_ref, w_ref, bj_ref, mu_ref, out_ref):
    _pair_body(pair_ref, ca_rows_ref, ca_all_ref, None,
               gp_ref, bp_ref, w_ref, bj_ref, mu_ref, out_ref)


# --------------------------------------------------------------------------
# Tile selection (largest row tile that divides L and fits the VMEM budget)
# --------------------------------------------------------------------------
_TILE_CANDIDATES = (512, 256, 128, 64, 32, 16, 8)


def _pick_tile(L, per_row_bytes, budget_bytes):
    for t in _TILE_CANDIDATES:
        if t <= L and L % t == 0 and t * per_row_bytes <= budget_bytes:
            return t
    return L  # small / irregular L: one full-row tile (still legal block shape)


# --------------------------------------------------------------------------
# Wrapper
# --------------------------------------------------------------------------
def recycling_forward(msa, pair, xyz, state, sctors, params, mask_recycle=None,
                      msa_tile_rows=None, pair_tile_rows=None):
    """Pallas implementation of Recycling.forward. Returns (msa, pair, state)."""
    del sctors  # not used by the reference forward
    B, L, d_msa = msa.shape
    d_pair = pair.shape[-1]
    d_rbf = params["proj_w"].shape[0]
    f32 = jnp.float32

    # Small parameters in f32, lane-dense 2-D layouts.
    g_msa = params["ln_msa_g"].reshape(1, d_msa).astype(f32)
    b_msa = params["ln_msa_b"].reshape(1, d_msa).astype(f32)
    g_pair = params["ln_pair_g"].reshape(1, d_pair).astype(f32)
    b_pair = params["ln_pair_b"].reshape(1, d_pair).astype(f32)
    w = params["proj_w"].astype(f32)                     # (d_rbf, d_pair) == Linear.weight.T
    bj = params["proj_b"].reshape(1, d_pair).astype(f32)
    mu = jnp.linspace(RBF_D_MIN, RBF_D_MAX, d_rbf, dtype=f32).reshape(1, d_rbf)

    ca = xyz[:, :, 1, :].astype(f32)                     # (B, L, 3)

    # ----------------------------- MSA LayerNorm ----------------------------
    msa_isz = msa.dtype.itemsize
    if msa_tile_rows is None:
        # 2x in + 2x out (double-buffered, native dtype) + f32 temporaries.
        per_row = d_msa * (4 * msa_isz + 8)
        tile_l = _pick_tile(L, per_row, 8 * 1024 * 1024)
    else:
        tile_l = msa_tile_rows

    msa_out = pl.pallas_call(
        _msa_ln_kernel,
        out_shape=jax.ShapeDtypeStruct((B, L, d_msa), msa.dtype),
        grid_spec=pltpu.PrefetchScalarGridSpec(
            num_scalar_prefetch=0,
            grid=(B, pl.cdiv(L, tile_l)),
            in_specs=[
                pl.BlockSpec((1, tile_l, d_msa), lambda b, i: (b, i, 0)),
                pl.BlockSpec((1, d_msa), lambda b, i: (0, 0)),
                pl.BlockSpec((1, d_msa), lambda b, i: (0, 0)),
            ],
            out_specs=pl.BlockSpec((1, tile_l, d_msa), lambda b, i: (b, i, 0)),
        ),
        compiler_params=pltpu.CompilerParams(
            dimension_semantics=("parallel", "parallel")),
    )(msa, g_msa, b_msa)

    # --------------------- Pair LayerNorm + RBF projection ------------------
    pair_isz = pair.dtype.itemsize
    if pair_tile_rows is None:
        # Per row of the tile: double-buffered in/out pair blocks (native dtype),
        # f32 LN + projection temporaries, f32 rbf block, mask stream, misc.
        per_row = L * (d_pair * (4 * pair_isz + 8) + d_rbf * 4 + 2 * 4 + 16)
        tile_i = _pick_tile(L, per_row, 36 * 1024 * 1024)
    else:
        tile_i = pair_tile_rows

    has_mask = mask_recycle is not None
    pair_inputs = [pair, ca, ca]
    pair_in_specs = [
        pl.BlockSpec((1, tile_i, L, d_pair), lambda b, i: (b, i, 0, 0)),
        pl.BlockSpec((1, tile_i, 3), lambda b, i: (b, i, 0)),   # Ca rows of this tile
        pl.BlockSpec((1, L, 3), lambda b, i: (b, 0, 0)),        # all Ca
    ]
    if has_mask:
        pair_inputs.append(mask_recycle.astype(f32))
        pair_in_specs.append(pl.BlockSpec((1, tile_i, L), lambda b, i: (b, i, 0)))
    pair_inputs += [g_pair, b_pair, w, bj, mu]
    pair_in_specs += [
        pl.BlockSpec((1, d_pair), lambda b, i: (0, 0)),
        pl.BlockSpec((1, d_pair), lambda b, i: (0, 0)),
        pl.BlockSpec((d_rbf, d_pair), lambda b, i: (0, 0)),
        pl.BlockSpec((1, d_pair), lambda b, i: (0, 0)),
        pl.BlockSpec((1, d_rbf), lambda b, i: (0, 0)),
    ]

    pair_kernel = _pair_kernel_mask if has_mask else _pair_kernel_nomask

    pair_out = pl.pallas_call(
        pair_kernel,
        out_shape=jax.ShapeDtypeStruct((B, L, L, d_pair), pair.dtype),
        grid_spec=pltpu.PrefetchScalarGridSpec(
            num_scalar_prefetch=0,
            grid=(B, pl.cdiv(L, tile_i)),
            in_specs=pair_in_specs,
            out_specs=pl.BlockSpec((1, tile_i, L, d_pair),
                                   lambda b, i: (b, i, 0, 0)),
        ),
        compiler_params=pltpu.CompilerParams(
            dimension_semantics=("parallel", "parallel"),
            vmem_limit_bytes=48 * 1024 * 1024,   # fits v7x's 64 MiB VMEM
        ),
    )(*pair_inputs)

    return msa_out, pair_out, state


# --------------------------------------------------------------------------
# Pure-JAX reference (mirrors the PyTorch forward exactly)
# --------------------------------------------------------------------------
def recycling_reference(msa, pair, xyz, state, params, mask_recycle=None):
    def ln(x, g, b):
        m = x.mean(-1, keepdims=True)
        v = ((x - m) ** 2).mean(-1, keepdims=True)
        return (x - m) / jnp.sqrt(v + LN_EPS) * g + b

    msa_n = ln(msa, params["ln_msa_g"], params["ln_msa_b"])
    pair_n = ln(pair, params["ln_pair_g"], params["ln_pair_b"])
    ca = xyz[:, :, 1]
    diff = ca[:, :, None, :] - ca[:, None, :, :]
    d = jnp.sqrt(jnp.sum(diff * diff, -1))                             # cdist
    d_rbf = params["proj_w"].shape[0]
    mu = jnp.linspace(RBF_D_MIN, RBF_D_MAX, d_rbf)
    sigma = (RBF_D_MAX - RBF_D_MIN) / RBF_D_COUNT
    rbf = jnp.exp(-(((d[..., None] - mu) / sigma) ** 2))
    if mask_recycle is not None:
        rbf = mask_recycle[..., None].astype(jnp.float32) * rbf
    proj = rbf @ params["proj_w"] + params["proj_b"]
    return msa_n, pair_n + proj, state


# --------------------------------------------------------------------------
# Main
# --------------------------------------------------------------------------
if __name__ == "__main__":
    B, L = 2, 16
    d_msa, d_pair, d_state, d_rbf = 32, 32, 16, RBF_D_COUNT
    natoms = 3

    key = jax.random.PRNGKey(0)
    keys = jax.random.split(key, 10)

    msa = jax.random.normal(keys[0], (B, L, d_msa), jnp.float32)
    pair = jax.random.normal(keys[1], (B, L, L, d_pair), jnp.float32)
    xyz = 5.0 * jax.random.normal(keys[2], (B, L, natoms, 3), jnp.float32)
    state = jax.random.normal(keys[3], (B, L, d_state), jnp.float32)
    sctors = jax.random.normal(keys[4], (B, L, 20, 2), jnp.float32)
    mask_recycle = (jax.random.uniform(keys[5], (B, L, L)) > 0.3)

    params = {
        "ln_msa_g": 1.0 + 0.1 * jax.random.normal(keys[6], (d_msa,), jnp.float32),
        "ln_msa_b": 0.1 * jax.random.normal(keys[7], (d_msa,), jnp.float32),
        "ln_pair_g": 1.0 + 0.1 * jax.random.normal(keys[8], (d_pair,), jnp.float32),
        "ln_pair_b": 0.1 * jax.random.normal(keys[9], (d_pair,), jnp.float32),
        # proj_w stored as (d_rbf, d_pair) == PyTorch Linear.weight.T
        "proj_w": (jax.random.normal(jax.random.PRNGKey(42), (d_rbf, d_pair),
                                     jnp.float32) / jnp.sqrt(float(d_rbf))),
        "proj_b": jnp.zeros((d_pair,), jnp.float32),
    }

    # With mask: force a sub-L row tile (8) so the multi-tile index maps are
    # exercised even at this small L.
    msa_o, pair_o, state_o = recycling_forward(
        msa, pair, xyz, state, sctors, params, mask_recycle=mask_recycle,
        msa_tile_rows=8, pair_tile_rows=8)
    jax.block_until_ready((msa_o, pair_o, state_o))

    msa_r, pair_r, state_r = recycling_reference(
        msa, pair, xyz, state, params, mask_recycle=mask_recycle)

    assert jnp.allclose(msa_o, msa_r, rtol=1e-4, atol=1e-4)
    assert jnp.allclose(pair_o, pair_r, rtol=1e-4, atol=1e-4)
    assert jnp.allclose(state_o, state_r)

    # Without mask (no-mask kernel variant, auto tile selection).
    msa_o2, pair_o2, state_o2 = recycling_forward(
        msa, pair, xyz, state, sctors, params, mask_recycle=None)
    jax.block_until_ready((msa_o2, pair_o2, state_o2))

    msa_r2, pair_r2, state_r2 = recycling_reference(
        msa, pair, xyz, state, params, mask_recycle=None)

    assert jnp.allclose(msa_o2, msa_r2, rtol=1e-4, atol=1e-4)
    assert jnp.allclose(pair_o2, pair_r2, rtol=1e-4, atol=1e-4)
    assert jnp.allclose(state_o2, state_r2)

    print("KERNEL_OK")
</pallas_src>

<mosaic_0001>
module attributes {stable_mosaic.version = 11 : i64} {
  func.func @_msa_ln_kernel(%arg0: i32, %arg1: i32, %arg2: memref<1x8x32xf32, #tpu.memory_space<vmem>>, %arg3: memref<1x32xf32, #tpu.memory_space<vmem>>, %arg4: memref<1x32xf32, #tpu.memory_space<vmem>>, %arg5: memref<1x8x32xf32, #tpu.memory_space<vmem>>) attributes {dimension_semantics = [#tpu.dimension_semantics<parallel>, #tpu.dimension_semantics<parallel>], iteration_bounds = array<i64: 2, 2>, scalar_prefetch = 0 : i64, scratch_operands = 0 : i64, tpu.core_type = #tpu.core_type<tc>, window_params = [{transform_indices = @transform_0, window_bounds = array<i64: 1, 8, 32>}, {pipeline_mode = #tpu.pipeline_mode<synchronous>, transform_indices = @transform_1, window_bounds = array<i64: 1, 32>}, {pipeline_mode = #tpu.pipeline_mode<synchronous>, transform_indices = @transform_2, window_bounds = array<i64: 1, 32>}, {transform_indices = @transform_3, window_bounds = array<i64: 1, 8, 32>}]} {
    %c0 = arith.constant 0 : index
    %c0_0 = arith.constant 0 : index
    %c0_1 = arith.constant 0 : index
    %0 = vector.load %arg2[%c0, %c0_0, %c0_1] : memref<1x8x32xf32, #tpu.memory_space<vmem>>, vector<1x8x32xf32>
    %cst = arith.constant dense<0.000000e+00> : vector<1x8xf32>
    %1 = vector.multi_reduction <add>, %0, %cst [2] : vector<1x8x32xf32> to vector<1x8xf32>
    %2 = vector.shape_cast %1 : vector<1x8xf32> to vector<1x8x1xf32>
    %cst_2 = arith.constant 3.200000e+01 : f32
    %3 = vector.broadcast %cst_2 : f32 to vector<1x8x1xf32>
    %4 = arith.divf %2, %3 : vector<1x8x1xf32>
    %5 = vector.broadcast %4 : vector<1x8x1xf32> to vector<1x8x32xf32>
    %6 = arith.subf %0, %5 : vector<1x8x32xf32>
    %7 = arith.mulf %6, %6 : vector<1x8x32xf32>
    %cst_3 = arith.constant dense<0.000000e+00> : vector<1x8xf32>
    %8 = vector.multi_reduction <add>, %7, %cst_3 [2] : vector<1x8x32xf32> to vector<1x8xf32>
    %9 = vector.shape_cast %8 : vector<1x8xf32> to vector<1x8x1xf32>
    %cst_4 = arith.constant 3.200000e+01 : f32
    %10 = vector.broadcast %cst_4 : f32 to vector<1x8x1xf32>
    %11 = arith.divf %9, %10 : vector<1x8x1xf32>
    %12 = vector.broadcast %4 : vector<1x8x1xf32> to vector<1x8x32xf32>
    %13 = arith.subf %0, %12 : vector<1x8x32xf32>
    %cst_5 = arith.constant 9.99999974E-6 : f32
    %14 = vector.broadcast %cst_5 : f32 to vector<1x8x1xf32>
    %15 = arith.addf %11, %14 : vector<1x8x1xf32>
    %16 = math.rsqrt %15 : vector<1x8x1xf32>
    %17 = vector.broadcast %16 : vector<1x8x1xf32> to vector<1x8x32xf32>
    %18 = arith.mulf %13, %17 : vector<1x8x32xf32>
    %c0_6 = arith.constant 0 : index
    %c0_7 = arith.constant 0 : index
    %19 = vector.load %arg3[%c0_6, %c0_7] : memref<1x32xf32, #tpu.memory_space<vmem>>, vector<1x32xf32>
    %20 = vector.shape_cast %19 : vector<1x32xf32> to vector<1x1x32xf32>
    %21 = vector.broadcast %20 : vector<1x1x32xf32> to vector<1x8x32xf32>
    %22 = arith.mulf %18, %21 : vector<1x8x32xf32>
    %c0_8 = arith.constant 0 : index
    %c0_9 = arith.constant 0 : index
    %23 = vector.load %arg4[%c0_8, %c0_9] : memref<1x32xf32, #tpu.memory_space<vmem>>, vector<1x32xf32>
    %24 = vector.shape_cast %23 : vector<1x32xf32> to vector<1x1x32xf32>
    %25 = vector.broadcast %24 : vector<1x1x32xf32> to vector<1x8x32xf32>
    %26 = arith.addf %22, %25 : vector<1x8x32xf32>
    %c0_10 = arith.constant 0 : index
    %c0_11 = arith.constant 0 : index
    %c0_12 = arith.constant 0 : index
    %27 = vector.load %arg5[%c0_10, %c0_11, %c0_12] : memref<1x8x32xf32, #tpu.memory_space<vmem>>, vector<1x8x32xf32>
    tpu.vector_store %arg5[%c0_10, %c0_11, %c0_12], %26 {strides = array<i32>} : memref<1x8x32xf32, #tpu.memory_space<vmem>>, vector<1x8x32xf32>,
    return
  }
  func.func @transform_0(%arg0: i32, %arg1: i32) -> (i32, i32, i32) {
    %c0_i32 = arith.constant 0 : i32
    %c0_i32_0 = arith.constant 0 : i32
    return %arg0, %arg1, %c0_i32 : i32, i32, i32
  }
  func.func @transform_1(%arg0: i32, %arg1: i32) -> (i32, i32) {
    %c0_i32 = arith.constant 0 : i32
    %c0_i32_0 = arith.constant 0 : i32
    %c0_i32_1 = arith.constant 0 : i32
    return %c0_i32, %c0_i32_0 : i32, i32
  }
  func.func @transform_2(%arg0: i32, %arg1: i32) -> (i32, i32) {
    %c0_i32 = arith.constant 0 : i32
    %c0_i32_0 = arith.constant 0 : i32
    %c0_i32_1 = arith.constant 0 : i32
    return %c0_i32, %c0_i32_0 : i32, i32
  }
  func.func @transform_3(%arg0: i32, %arg1: i32) -> (i32, i32, i32) {
    %c0_i32 = arith.constant 0 : i32
    %c0_i32_0 = arith.constant 0 : i32
    return %arg0, %arg1, %c0_i32 : i32, i32, i32
  }
}

</mosaic_0001>

<llo_original>
// kernel: tpu_custom_call.1
$region0: #{tpu_custom_call.1}
  #allocation0 [shape = 'u32[]', space=smem, size = 0x4, offset = 0x4, fixed_abs, tag = 'smem constant byte address 0x4 - core index']
  #allocation1 [shape = 'u32[144,128]{1,0:T(1,128)}', space=vmem, size = 0x12000, scoped, tag = 'internal scratch']
  %s0 = inlined_call_operand.hbm [shape: f32[2,16,32], index: 0, kind: input, shape index: {}]
  %s1 = inlined_call_operand.vmem [shape: f32[1,32], index: 1, kind: input, shape index: {}]
  %s2 = inlined_call_operand.vmem [shape: f32[1,32], index: 2, kind: input, shape index: {}]
  %s3 = inlined_call_operand.hbm [shape: f32[2,16,32], index: 3, kind: output, shape index: {}]
  %s4 = sld [smem:[#allocation0]]
  $region49: #{tpu_custom_call.1} parent=0
    _
  %s6 = ssub.s32 1, %s4
  %s7 = scalar_select 0, %s6, %s4
  $region1: #{tpu_custom_call.1} parent=0
    #allocation2 [shape = 'u8[8192]{0}', space=vmem, size = 0x2000, scoped, tag = 'input window, operand 0']
    #allocation3 [shape = 's32[2]{0}', space=sflag, size = 0x8, scoped, tag = 'scoped memory for tpu_custom_call.1']
    #allocation4 [shape = 's32[2]{0}', space=sflag, size = 0x8, scoped, tag = 'scoped memory for tpu_custom_call.1']
    #allocation5 [shape = 'u8[8192]{0}', space=vmem, size = 0x2000, scoped, tag = 'output window, operand 0']
    %8 = vsyncpa [#allocation3], 0
    %s9 = scalar_lea.sflag [#allocation3], 1
    %10 = vsyncpa %s9, 0
    %11 = vsyncpa [#allocation4], 0
    %s12 = scalar_lea.sflag [#allocation4], 1
    %13 = vsyncpa %s12, 0
    loop: start=0, step=1, limit=6
    $region2: #{tpu_custom_call.1} parent=1 // loop_pre_header
      _
    $region3: #{tpu_custom_call.1} parent=1 // loop_header
      %s15 = sphi 0, %s19
      %p16 = scmp.ge.s32.totalorder %s15, 6
      %s22 = sphi 0, %s34
      %s23 = sphi 0, %s30
      %s24 = sphi 0, %s22
      %s25 = sphi 0, %s23
      %s26 = sphi 0, %s24
      %s27 = sphi 0, %s25
      %s39 = sphi 0, %s41
      %s42 = sphi 0, %s39
      %s43 = sphi 0, %s42
      %s59 = sphi 0, %s43
      %s63 = sphi 0, %s63
      %s65 = sphi 0, %s63
      %s66 = sphi 0, %s65
      %s80 = sphi 0, %s66
      %s84 = sphi 0, %s84
      %s86 = sphi 0, %s84
      %s87 = sphi 0, %s86
      %s101 = sphi 0, %s87
      %s109 = sphi 0, %s111
      %s112 = sphi 0, %s109
      %s113 = sphi 0, %s112
      %s129 = sphi 0, %s113
    $region4: #{tpu_custom_call.1} parent=1 // loop_header_branch
      %18 = sbr.rel (%p16) target = $region8
    $region5: #{tpu_custom_call.1} parent=1 // loop_body
      %s20 = ssub.s32 %s15, 1
      %s21 = ssub.s32 %s15, 2
      %s28 = sadd.s32 1, %s23
      %p29 = scmp.ge.s32.totalorder %s28, 2
      %s30 = scalar_select %p29, 0, %s28
      %s31 = sadd.s32 1, %s22
      %s32 = scalar_select %p29, %s31, %s22
      %p33 = scmp.ge.s32.totalorder %s32, 2
      %s34 = scalar_select %p33, 0, %s32
      %s35 = ssub.s32 %s22, %s34
      %s36 = ssub.s32 %s23, %s30
      %s37 = sor.u32 %s35, %s36
      %p38 = scmp.eq.s32.totalorder %s37, 0
      %s40 = sadd.s32 %s39, 1
      %s41 = scalar_select %p38, %s39, %s40
      %p44 = pneg %p38
      %p45 = scmp.eq.s32.totalorder %s15, 3
      %p46 = por %p44, %p45
      %p47 = scmp.ne.s32.totalorder %s39, %s42
      %p48 = scmp.eq.s32.totalorder %s15, 0
      %p49 = por %p47, %p48
      %p50 = scmp.ne.s32.totalorder %s39, %s42
      %p51 = scmp.eq.s32.totalorder %s20, 3
      %p52 = por %p50, %p51
      %p53 = scmp.ne.s32.totalorder %s42, %s43
      %p54 = scmp.eq.s32.totalorder %s20, 0
      %p55 = por %p53, %p54
      %p56 = scmp.ne.s32.totalorder %s42, %s43
      %p57 = scmp.eq.s32.totalorder %s21, 3
      %p58 = por %p56, %p57
      %p60 = scmp.ne.s32.totalorder %s43, %s59
      %p61 = scmp.eq.s32.totalorder %s21, 0
      %p62 = por %p60, %p61
      %s64 = sadd.s32 %s63, 1
      %p67 = scmp.eq.s32.totalorder %s15, 3
      %p68 = scmp.ne.s32.totalorder %s63, %s65
      %p69 = scmp.eq.s32.totalorder %s15, 0
      %p70 = por %p68, %p69
      %p71 = scmp.ne.s32.totalorder %s63, %s65
      %p72 = scmp.eq.s32.totalorder %s20, 3
      %p73 = por %p71, %p72
      %p74 = scmp.ne.s32.totalorder %s65, %s66
      %p75 = scmp.eq.s32.totalorder %s20, 0
      %p76 = por %p74, %p75
      %p77 = scmp.ne.s32.totalorder %s65, %s66
      %p78 = scmp.eq.s32.totalorder %s21, 3
      %p79 = por %p77, %p78
      %p81 = scmp.ne.s32.totalorder %s66, %s80
      %p82 = scmp.eq.s32.totalorder %s21, 0
      %p83 = por %p81, %p82
      %s85 = sadd.s32 %s84, 1
      %p88 = scmp.eq.s32.totalorder %s15, 3
      %p89 = scmp.ne.s32.totalorder %s84, %s86
      %p90 = scmp.eq.s32.totalorder %s15, 0
      %p91 = por %p89, %p90
      %p92 = scmp.ne.s32.totalorder %s84, %s86
      %p93 = scmp.eq.s32.totalorder %s20, 3
      %p94 = por %p92, %p93
      %p95 = scmp.ne.s32.totalorder %s86, %s87
      %p96 = scmp.eq.s32.totalorder %s20, 0
      %p97 = por %p95, %p96
      %p98 = scmp.ne.s32.totalorder %s86, %s87
      %p99 = scmp.eq.s32.totalorder %s21, 3
      %p100 = por %p98, %p99
      %p102 = scmp.ne.s32.totalorder %s87, %s101
      %p103 = scmp.eq.s32.totalorder %s21, 0
      %p104 = por %p102, %p103
      %s105 = ssub.s32 %s22, %s34
      %s106 = ssub.s32 %s23, %s30
      %s107 = sor.u32 %s105, %s106
      %p108 = scmp.eq.s32.totalorder %s107, 0
      %s110 = sadd.s32 %s109, 1
      %s111 = scalar_select %p108, %s109, %s110
      %p114 = pneg %p108
      %p115 = scmp.eq.s32.totalorder %s15, 3
      %p116 = por %p114, %p115
      %p117 = scmp.ne.s32.totalorder %s109, %s112
      %p118 = scmp.eq.s32.totalorder %s15, 0
      %p119 = por %p117, %p118
      %p120 = scmp.ne.s32.totalorder %s109, %s112
      %p121 = scmp.eq.s32.totalorder %s20, 3
      %p122 = por %p120, %p121
      %p123 = scmp.ne.s32.totalorder %s112, %s113
      %p124 = scmp.eq.s32.totalorder %s20, 0
      %p125 = por %p123, %p124
      %p126 = scmp.ne.s32.totalorder %s112, %s113
      %p127 = scmp.eq.s32.totalorder %s21, 3
      %p128 = por %p126, %p127
      %p130 = scmp.ne.s32.totalorder %s113, %s129
      %p131 = scmp.eq.s32.totalorder %s21, 0
      %p132 = por %p130, %p131
      %p133 = scmp.le.s32.totalorder 1, %s15
      %p134 = scmp.lt.s32.totalorder %s15, 5
      %p135 = pnand %p133, %p134
      %p136 = pneg %p135
      // Predicated region
      $region9: #{tpu_custom_call.1} parent=5 // pred_check
        _
      $region10: #{tpu_custom_call.1} parent=5 // pred_check_branch
        %138 = sbr.rel (%p135) target = $region12
      $region11: #{tpu_custom_call.1} parent=5 // pred_region
        %s139 = ssub.s32 %s15, 1
        // Predicated region
        $region13: #{tpu_custom_call.1} parent=11 // pred_check
          %p140 = pneg %p76
        $region14: #{tpu_custom_call.1} parent=11 // pred_check_branch
          %142 = sbr.rel (%p140) target = $region16
        $region15: #{tpu_custom_call.1} parent=11 // pred_region
          _
        $region16: #{tpu_custom_call.1} parent=11 // pred_fallthru
          _
        // Predicated region
        $region17: #{tpu_custom_call.1} parent=11 // pred_check
          %p143 = pneg %p97
        $region18: #{tpu_custom_call.1} parent=11 // pred_check_branch
          %145 = sbr.rel (%p143) target = $region20
        $region19: #{tpu_custom_call.1} parent=11 // pred_region
          _
        $region20: #{tpu_custom_call.1} parent=11 // pred_fallthru
          _
      $region12: #{tpu_custom_call.1} parent=5 // pred_fallthru
        _
      %p146 = scmp.lt.s32.totalorder %s15, 4
      // Predicated region
      $region21: #{tpu_custom_call.1} parent=5 // pred_check
        %p147 = pneg %p146
      $region22: #{tpu_custom_call.1} parent=5 // pred_check_branch
        %149 = sbr.rel (%p147) target = $region24
      $region23: #{tpu_custom_call.1} parent=5 // pred_region
        // Predicated region
        $region25: #{tpu_custom_call.1} parent=23 // pred_check
          %p150 = pneg %p49
        $region26: #{tpu_custom_call.1} parent=23 // pred_check_branch
          %152 = sbr.rel (%p150) target = $region28
        $region27: #{tpu_custom_call.1} parent=23 // pred_region
          %s153 = sand.u32 %s39, 1
          %s154 = scalar_lea.sflag [#allocation3], %s153
          %s155 = sand.u32 %s39, 1
          %s156 = smul.addr %s155, 8
          %s157 = scalar_lea.vmem [#allocation2], %s156
          %s159 = ssub.s32 128, 128
          %160 = vsyncadd %s154, %s159
          %s161 = smul.addr %s22, 2
          %s162 = sadd.s32 %s23, %s161
          %s163 = smul.addr %s162, 128
          %s164 = scalar_lea.hbm %s0, %s163
          %s166 = sshll.u32 %s157, 4
          %s167 = int_to_ptr.vmem [resolvable:$true] %s166
          %169 = dma.hbm_to_vmem [thread:$0]  %s164, 128, %s167, %s154
        $region28: #{tpu_custom_call.1} parent=23 // pred_fallthru
          _
      $region24: #{tpu_custom_call.1} parent=5 // pred_fallthru
        _
      %p170 = scmp.le.s32.totalorder 1, %s15
      %p171 = scmp.lt.s32.totalorder %s15, 5
      %p172 = pnand %p170, %p171
      %p173 = pneg %p172
      // Predicated region
      $region29: #{tpu_custom_call.1} parent=5 // pred_check
        _
      $region30: #{tpu_custom_call.1} parent=5 // pred_check_branch
        %175 = sbr.rel (%p172) target = $region32
      $region31: #{tpu_custom_call.1} parent=5 // pred_region
        %s176 = ssub.s32 %s15, 1
        %s177 = sand.u32 %s42, 1
        %s178 = scalar_lea.sflag [#allocation3], %s177
        %s179 = sand.u32 %s42, 1
        %s180 = smul.addr %s179, 8
        %s181 = scalar_lea.vmem [#allocation2], %s180
        // Predicated region
        $region33: #{tpu_custom_call.1} parent=31 // pred_check
          %p182 = pneg %p55
        $region34: #{tpu_custom_call.1} parent=31 // pred_check_branch
          %184 = sbr.rel (%p182) target = $region36
        $region35: #{tpu_custom_call.1} parent=31 // pred_region
          %185 = dma.done %s178, 128
        $region36: #{tpu_custom_call.1} parent=31 // pred_fallthru
          _
        %s186 = sand.u32 %s42, 1
        %s187 = scalar_lea.sflag [#allocation3], %s186
        %s188 = sand.u32 %s42, 1
        %s189 = smul.addr %s188, 8
        %s190 = scalar_lea.vmem [#allocation2], %s189
        %p191 = pneg %p55
        %p192 = pneg %p52
        %p193 = pneg %p76
        %p194 = pneg %p73
        %p195 = pneg %p97
        %p196 = pneg %p94
        %p197 = pneg %p125
        %p198 = pneg %p122
        %s199 = sand.u32 %s112, 1
        %s200 = scalar_lea.sflag [#allocation4], %s199
        %s201 = sand.u32 %s112, 1
        %s202 = smul.addr %s201, 8
        %s203 = scalar_lea.vmem [#allocation5], %s202
        %v204 = vld [vmem:[%s181] sm:$0xff]
        %vm205 = vcmask 261120
        %v206 = vsel %vm205, %v204, 0.0
        %207 = vadd.xlane.f32.xlu0 %v206
        %v208 = vpop.xlane.xlu0 %207
        %v209 = vrcp.pop 32.0
        %v210 = vmul.f32 %v208, %v209
        %v211 = vsub.f32 %v204, %v210
        %v212 = vmul.f32 %v211, %v211
        %v213 = vsel %vm205, %v212, 0.0
        %214 = vadd.xlane.f32.xlu0 %v213
        %v215 = vpop.xlane.xlu0 %214
        %v216 = vmul.f32 %v215, %v209
        %v217 = vadd.f32 %v216, 1e-05
        %v218 = vrsqrt.pop %v217
        %v219 = vmul.f32 %v211, %v218
        %v220 = vld [vmem:[%s1] sm:$0x1]
        %v222 = vlaneseq
        %v223 = vshrl.u32 %v222, 7
        %v224 = vsub.s32 0, %v223
        %v225 = vrot.slane %v220, %v224
        %v227 = vmul.f32 %v219, %v225
        %v228 = vld [vmem:[%s2] sm:$0x1]
        %v230 = vlaneseq
        %v231 = vshrl.u32 %v230, 7
        %v232 = vsub.s32 0, %v231
        %v233 = vrot.slane %v228, %v232
        %v235 = vadd.f32 %v227, %v233
        %236 = vst.msk [vmem:[%s203] sm:$0xff] %vm205, %v235
        %s237 = sand.u32 %s112, 1
        %s238 = scalar_lea.sflag [#allocation4], %s237
        %s239 = sand.u32 %s112, 1
        %s240 = smul.addr %s239, 8
        %s241 = scalar_lea.vmem [#allocation5], %s240
        // Predicated region
        $region37: #{tpu_custom_call.1} parent=31 // pred_check
          %p242 = pneg %p122
        $region38: #{tpu_custom_call.1} parent=31 // pred_check_branch
          %244 = sbr.rel (%p242) target = $region40
        $region39: #{tpu_custom_call.1} parent=31 // pred_region
          %s246 = ssub.s32 128, 128
          %247 = vsyncadd %s238, %s246
          %s248 = smul.addr %s24, 2
          %s249 = sadd.s32 %s25, %s248
          %s250 = smul.addr %s249, 128
          %s251 = scalar_lea.hbm %s3, %s250
          %s253 = sshll.u32 %s241, 4
          %s254 = int_to_ptr.vmem [resolvable:$true] %s253
          %256 = dma.vmem_to_hbm [thread:$0]  %s254, 128, %s251, %s238
        $region40: #{tpu_custom_call.1} parent=31 // pred_fallthru
          _
      $region32: #{tpu_custom_call.1} parent=5 // pred_fallthru
        _
      %p257 = scmp.le.s32.totalorder 2, %s15
      // Predicated region
      $region41: #{tpu_custom_call.1} parent=5 // pred_check
        %p258 = pneg %p257
      $region42: #{tpu_custom_call.1} parent=5 // pred_check_branch
        %260 = sbr.rel (%p258) target = $region44
      $region43: #{tpu_custom_call.1} parent=5 // pred_region
        %s261 = ssub.s32 %s15, 2
        // Predicated region
        $region45: #{tpu_custom_call.1} parent=43 // pred_check
          %p262 = pneg %p128
        $region46: #{tpu_custom_call.1} parent=43 // pred_check_branch
          %264 = sbr.rel (%p262) target = $region48
        $region47: #{tpu_custom_call.1} parent=43 // pred_region
          %s265 = sand.u32 %s113, 1
          %s266 = scalar_lea.sflag [#allocation4], %s265
          %s267 = sand.u32 %s113, 1
          %s268 = smul.addr %s267, 8
          %s269 = scalar_lea.vmem [#allocation5], %s268
          %270 = dma.done %s266, 128
        $region48: #{tpu_custom_call.1} parent=43 // pred_fallthru
          _
      $region44: #{tpu_custom_call.1} parent=5 // pred_fallthru
        _
    $region6: #{tpu_custom_call.1} parent=1 // loop_footer
      %s19 = sadd.s32 1, %s15
    $region7: #{tpu_custom_call.1} parent=1 // loop_footer_branch
      %14 = sbr.rel target = $region3
    $region8: #{tpu_custom_call.1} parent=1 // loop_exit
      _
    %271 = vsyncpa [#allocation3], 1
    %s272 = scalar_lea.sflag [#allocation3], 1
    %273 = vsyncpa %s272, 1
    %274 = vsyncpa [#allocation4], 1
    %s275 = scalar_lea.sflag [#allocation4], 1
    %276 = vsyncpa %s275, 1

</llo_original>
